<compile_context>
chip_gen: v6e
topology: v6e:2x2x1
jax: 0.10.0
libtpu: 0.0.40
codegen_flags: <defaults>
</compile_context>

<pallas_src>
import jax
import jax.numpy as jnp
from jax.experimental import pallas as pl
from jax.experimental.pallas import tpu as pltpu


# --------------------------------------------------------------------------- #
# Kernel
# --------------------------------------------------------------------------- #
def _make_categorical_kernel(include_raw_logits: bool):
    def kernel(x_ref, wt_ref, b_ref, *out_refs):
        # x:  [TB, In]        (f32 or bf16)
        # wt: [In, OutP]      (pre-transposed, pre-padded, pre-cast on host)
        # b:  [1, OutP]       (f32; padded lanes hold -1e30 so softmax ignores them)
        logits = jnp.dot(
            x_ref[...], wt_ref[...], preferred_element_type=jnp.float32
        ) + b_ref[...]

        # Categorical(logits=...) normalization, all in f32.
        m = jnp.max(logits, axis=-1, keepdims=True)
        z = logits - m
        e = jnp.exp(z)
        s = jnp.sum(e, axis=-1, keepdims=True)
        logp = z - jnp.log(s)
        probs = e * pl.reciprocal(s, approx=False)   # reuse e; [TB,1] reciprocal only

        if include_raw_logits:
            raw_ref, logp_ref, probs_ref = out_refs
            raw_ref[...] = logits
        else:
            logp_ref, probs_ref = out_refs
        logp_ref[...] = logp
        probs_ref[...] = probs

    return kernel


# --------------------------------------------------------------------------- #
# Tiling / budgets
# --------------------------------------------------------------------------- #
def _round_up(x: int, m: int) -> int:
    return ((x + m - 1) // m) * m


def _vmem_capacity_bytes() -> int:
    try:
        return int(pltpu.get_tpu_info().vmem_capacity_bytes)
    except Exception:
        return 64 << 20   # conservative default (v7x per-TC VMEM)


def _choose_batch_tile(batch, x_itemsize, num_inputs, out_p, n_slabs, budget_bytes):
    """Largest batch tile whose double-buffered x + output footprint fits the budget."""
    per_row = 2 * (x_itemsize * num_inputs + 4 * n_slabs * out_p)   # 2x (x row + out rows)
    tb = max(budget_bytes // per_row, 8)
    if tb >= 256:
        tb = (tb // 256) * 256       # MXU-friendly M tiles
    else:
        tb = (tb // 8) * 8
    tb = int(min(tb, 2048))
    # Single block when the whole batch fits (block == full dim is always legal).
    return batch if batch <= tb else tb


# --------------------------------------------------------------------------- #
# Wrapper
# --------------------------------------------------------------------------- #
def categorical_net_forward(x, weight, bias, *, include_raw_logits=False,
                            use_bf16_matmul=False):
    """x: [B, In]; weight: [Out, In] (PyTorch layout); bias: [Out].

    Returns (raw_logits_or_None, normalized_log_probs, probs), each [B, Out].
    """
    batch, num_inputs = x.shape
    num_outputs, num_inputs_w = weight.shape
    assert num_inputs_w == num_inputs, "weight must be [num_outputs, num_inputs]"

    out_p = _round_up(num_outputs, 128)         # lane-dense action dimension
    n_slabs = 3 if include_raw_logits else 2

    # Host-side, once per call: transpose to [In, OutP], zero-pad the extra
    # output columns; bias padding is -1e30 (not -inf, avoids inf-inf NaN) so
    # padded logits never win the softmax.
    wt = jnp.zeros((num_inputs, out_p), dtype=weight.dtype)
    wt = wt.at[:, :num_outputs].set(weight.T)
    b2 = jnp.full((1, out_p), -1e30, dtype=jnp.float32)
    b2 = b2.at[0, :num_outputs].set(bias.astype(jnp.float32))

    if use_bf16_matmul:
        x = x.astype(jnp.bfloat16)              # halves the dominant HBM read
        wt = wt.astype(jnp.bfloat16)

    x_itemsize = jnp.dtype(x.dtype).itemsize
    w_itemsize = jnp.dtype(wt.dtype).itemsize

    cap = _vmem_capacity_bytes()
    resident = 2 * (w_itemsize * num_inputs * out_p + 4 * out_p)    # weight + bias buffers
    budget = min(max(cap // 2, 24 << 20), 96 << 20) - resident
    budget = max(budget, 8 << 20)

    tb = _choose_batch_tile(batch, x_itemsize, num_inputs, out_p, n_slabs, budget)
    grid = (pl.cdiv(batch, tb),)

    footprint = resident + 2 * tb * (x_itemsize * num_inputs + 4 * n_slabs * out_p)
    vmem_limit = int(min(max(footprint + (4 << 20), 32 << 20), cap * 3 // 4))

    out_shapes = tuple(
        jax.ShapeDtypeStruct((batch, out_p), jnp.float32) for _ in range(n_slabs)
    )
    out_specs = [pl.BlockSpec((tb, out_p), lambda i: (i, 0)) for _ in range(n_slabs)]

    results = pl.pallas_call(
        _make_categorical_kernel(include_raw_logits),
        out_shape=out_shapes,
        grid=grid,
        in_specs=[
            pl.BlockSpec((tb, num_inputs), lambda i: (i, 0)),           # x: tiled over batch
            pl.BlockSpec((num_inputs, out_p), lambda i: (0, 0)),        # W^T: VMEM-resident
            pl.BlockSpec((1, out_p), lambda i: (0, 0)),                 # bias: VMEM-resident
        ],
        out_specs=out_specs,
        compiler_params=pltpu.CompilerParams(
            dimension_semantics=("parallel",),
            vmem_limit_bytes=vmem_limit,
        ),
    )(x, wt, b2)

    if include_raw_logits:
        raw_p, logp_p, probs_p = results
        raw_logits = raw_p[:, :num_outputs]
    else:
        logp_p, probs_p = results
        raw_logits = None
    log_probs = logp_p[:, :num_outputs]
    probs = probs_p[:, :num_outputs]
    return raw_logits, log_probs, probs


# --------------------------------------------------------------------------- #
# Init + distribution wrapper (host side)
# --------------------------------------------------------------------------- #
def orthogonal_init(key, rows, cols, gain=0.01, dtype=jnp.float32):
    """Deterministic orthogonal init matching nn.init.orthogonal_ semantics."""
    flat = jax.random.normal(key, (max(rows, cols), min(rows, cols)), dtype=jnp.float32)
    q, r = jnp.linalg.qr(flat)
    d = jnp.sign(jnp.diagonal(r))
    q = q * d[None, :]
    if rows < cols:
        q = q.T
    return (gain * q[:rows, :cols]).astype(dtype)


class CustomFixedCategoricalJax:
    """Thin host-side wrapper mirroring CustomFixedCategorical's accessors."""

    def __init__(self, raw_logits, log_probs, probs):
        self.raw_logits = raw_logits   # linear-layer output (may be None)
        self.logits = log_probs        # normalized log-probs (torch.distributions convention)
        self.probs = probs

    def mode(self):
        return jnp.argmax(self.probs, axis=-1, keepdims=True)

    def log_probs(self, actions):
        a = actions.reshape(actions.shape[0])
        lp = jnp.take_along_axis(self.logits, a[:, None], axis=-1)
        return lp.reshape(actions.shape[0], -1).sum(-1)[:, None]

    # TODO(synk): sample() needs a PRNG; stochastic sampling is left to host-side jax.random.


# --------------------------------------------------------------------------- #
# Self-test
# --------------------------------------------------------------------------- #
if __name__ == "__main__":
    # Small shapes consistent with CategoricalNet(num_inputs, num_outputs).
    B, NUM_INPUTS, NUM_OUTPUTS = 8, 32, 16

    key = jax.random.PRNGKey(0)
    kx, kw = jax.random.split(key)

    x = jax.random.normal(kx, (B, NUM_INPUTS), dtype=jnp.float32)
    weight = orthogonal_init(kw, NUM_OUTPUTS, NUM_INPUTS, gain=0.01)   # [Out, In]
    bias = jnp.zeros((NUM_OUTPUTS,), dtype=jnp.float32)

    # Reference in plain JAX.
    ref_logits = x @ weight.T + bias
    ref_logp = jax.nn.log_softmax(ref_logits, axis=-1)
    ref_probs = jax.nn.softmax(ref_logits, axis=-1)

    # Default path: distribution only (no raw-logits writeback).
    none_logits, log_probs, probs = categorical_net_forward(x, weight, bias)
    jax.block_until_ready((log_probs, probs))
    assert none_logits is None
    assert jnp.allclose(log_probs, ref_logp, atol=1e-5)
    assert jnp.allclose(probs, ref_probs, atol=1e-5)
    assert jnp.allclose(jnp.sum(probs, axis=-1), 1.0, atol=1e-5)

    # Optional raw-logits path.
    raw_logits, lp2, p2 = categorical_net_forward(
        x, weight, bias, include_raw_logits=True)
    jax.block_until_ready((raw_logits, lp2, p2))
    assert jnp.allclose(raw_logits, ref_logits, atol=1e-5)
    assert jnp.allclose(lp2, ref_logp, atol=1e-5)
    assert jnp.allclose(p2, ref_probs, atol=1e-5)

    # bf16-MXU path (f32 accumulation + f32 softmax); looser tolerance.
    _, lp3, p3 = categorical_net_forward(x, weight, bias, use_bf16_matmul=True)
    jax.block_until_ready((lp3, p3))
    assert jnp.allclose(p3, ref_probs, atol=3e-2)
    assert jnp.allclose(jnp.sum(p3, axis=-1), 1.0, atol=1e-3)

    # Distribution accessors.
    dist = CustomFixedCategoricalJax(raw_logits, log_probs, probs)
    mode = jax.block_until_ready(dist.mode())
    assert jnp.array_equal(mode[:, 0], jnp.argmax(ref_probs, axis=-1))
    _ = jax.block_until_ready(dist.log_probs(mode))

    print("KERNEL_OK")
</pallas_src>

<mosaic_0001>
module attributes {stable_mosaic.version = 11 : i64} {
  func.func @kernel(%arg0: i32, %arg1: memref<8x32xf32, #tpu.memory_space<vmem>>, %arg2: memref<32x128xf32, #tpu.memory_space<vmem>>, %arg3: memref<1x128xf32, #tpu.memory_space<vmem>>, %arg4: memref<8x128xf32, #tpu.memory_space<vmem>>, %arg5: memref<8x128xf32, #tpu.memory_space<vmem>>) attributes {dimension_semantics = [#tpu.dimension_semantics<parallel>], iteration_bounds = array<i64: 1>, scalar_prefetch = 0 : i64, scratch_operands = 0 : i64, tpu.core_type = #tpu.core_type<tc>, window_params = [{transform_indices = @transform_0, window_bounds = array<i64: 8, 32>}, {pipeline_mode = #tpu.pipeline_mode<synchronous>, transform_indices = @transform_1, window_bounds = array<i64: 32, 128>}, {pipeline_mode = #tpu.pipeline_mode<synchronous>, transform_indices = @transform_2, window_bounds = array<i64: 1, 128>}, {transform_indices = @transform_3, window_bounds = array<i64: 8, 128>}, {transform_indices = @transform_4, window_bounds = array<i64: 8, 128>}]} {
    %c0 = arith.constant 0 : index
    %c0_0 = arith.constant 0 : index
    %0 = vector.load %arg1[%c0, %c0_0] : memref<8x32xf32, #tpu.memory_space<vmem>>, vector<8x32xf32>
    %c0_1 = arith.constant 0 : index
    %c0_2 = arith.constant 0 : index
    %1 = vector.load %arg2[%c0_1, %c0_2] : memref<32x128xf32, #tpu.memory_space<vmem>>, vector<32x128xf32>
    %cst = arith.constant dense<0.000000e+00> : vector<8x128xf32>
    %2 = tpu.matmul %0, %1, %cst {dimension_numbers = #tpu.dot_dimension_numbers<[1], [0], [0], [1], [0, 0, 1, 1], [], []>} : vector<8x32xf32>, vector<32x128xf32>, vector<8x128xf32> -> vector<8x128xf32>
    %c0_3 = arith.constant 0 : index
    %c0_4 = arith.constant 0 : index
    %3 = vector.load %arg3[%c0_3, %c0_4] : memref<1x128xf32, #tpu.memory_space<vmem>>, vector<1x128xf32>
    %4 = vector.broadcast %3 : vector<1x128xf32> to vector<8x128xf32>
    %5 = arith.addf %2, %4 : vector<8x128xf32>
    %cst_5 = arith.constant dense<0xFF800000> : vector<8xf32>
    %6 = vector.multi_reduction <maximumf>, %5, %cst_5 [1] : vector<8x128xf32> to vector<8xf32>
    %7 = vector.shape_cast %6 : vector<8xf32> to vector<8x1xf32>
    %8 = vector.broadcast %7 : vector<8x1xf32> to vector<8x128xf32>
    %9 = arith.subf %5, %8 : vector<8x128xf32>
    %10 = math.exp %9 : vector<8x128xf32>
    %cst_6 = arith.constant dense<0.000000e+00> : vector<8xf32>
    %11 = vector.multi_reduction <add>, %10, %cst_6 [1] : vector<8x128xf32> to vector<8xf32>
    %12 = vector.shape_cast %11 : vector<8xf32> to vector<8x1xf32>
    %13 = math.log %12 : vector<8x1xf32>
    %14 = vector.broadcast %13 : vector<8x1xf32> to vector<8x128xf32>
    %15 = arith.subf %9, %14 : vector<8x128xf32>
    %16 = tpu.reciprocal %12 : vector<8x1xf32> -> vector<8x1xf32>
    %17 = vector.broadcast %16 : vector<8x1xf32> to vector<8x128xf32>
    %18 = arith.mulf %10, %17 : vector<8x128xf32>
    %c0_7 = arith.constant 0 : index
    %c0_8 = arith.constant 0 : index
    %19 = vector.load %arg4[%c0_7, %c0_8] : memref<8x128xf32, #tpu.memory_space<vmem>>, vector<8x128xf32>
    tpu.vector_store %arg4[%c0_7, %c0_8], %15 {strides = array<i32>} : memref<8x128xf32, #tpu.memory_space<vmem>>, vector<8x128xf32>,
    %c0_9 = arith.constant 0 : index
    %c0_10 = arith.constant 0 : index
    %20 = vector.load %arg5[%c0_9, %c0_10] : memref<8x128xf32, #tpu.memory_space<vmem>>, vector<8x128xf32>
    tpu.vector_store %arg5[%c0_9, %c0_10], %18 {strides = array<i32>} : memref<8x128xf32, #tpu.memory_space<vmem>>, vector<8x128xf32>,
    return
  }
  func.func @transform_0(%arg0: i32) -> (i32, i32) {
    %c0_i32 = arith.constant 0 : i32
    %c0_i32_0 = arith.constant 0 : i32
    return %arg0, %c0_i32 : i32, i32
  }
  func.func @transform_1(%arg0: i32) -> (i32, i32) {
    %c0_i32 = arith.constant 0 : i32
    %c0_i32_0 = arith.constant 0 : i32
    %c0_i32_1 = arith.constant 0 : i32
    return %c0_i32, %c0_i32_0 : i32, i32
  }
  func.func @transform_2(%arg0: i32) -> (i32, i32) {
    %c0_i32 = arith.constant 0 : i32
    %c0_i32_0 = arith.constant 0 : i32
    %c0_i32_1 = arith.constant 0 : i32
    return %c0_i32, %c0_i32_0 : i32, i32
  }
  func.func @transform_3(%arg0: i32) -> (i32, i32) {
    %c0_i32 = arith.constant 0 : i32
    %c0_i32_0 = arith.constant 0 : i32
    return %arg0, %c0_i32 : i32, i32
  }
  func.func @transform_4(%arg0: i32) -> (i32, i32) {
    %c0_i32 = arith.constant 0 : i32
    %c0_i32_0 = arith.constant 0 : i32
    return %arg0, %c0_i32 : i32, i32
  }
}

</mosaic_0001>

<llo_original>
// kernel: tpu_custom_call.1
$region0: #{tpu_custom_call.1}
  #allocation0 [shape = 'u32[]', space=smem, size = 0x4, offset = 0x4, fixed_abs, tag = 'smem constant byte address 0x4 - core index']
  #allocation1 [shape = 'u32[144,128]{1,0:T(1,128)}', space=vmem, size = 0x12000, scoped, tag = 'internal scratch']
  %s0 = inlined_call_operand.hbm [shape: f32[8,32], index: 0, kind: input, shape index: {}]
  %s1 = inlined_call_operand.hbm [shape: f32[32,128], index: 1, kind: input, shape index: {}]
  %s2 = inlined_call_operand.vmem [shape: f32[1,128], index: 2, kind: input, shape index: {}]
  %s3 = inlined_call_operand.hbm [shape: f32[8,128], index: 3, kind: output, shape index: {0}]
  %s4 = inlined_call_operand.hbm [shape: f32[8,128], index: 4, kind: output, shape index: {1}]
  %5 = xla_tuple %s3, %s4
  %s6 = sld [smem:[#allocation0]]
  $region38: #{tpu_custom_call.1} parent=0
    _
  %s8 = ssub.s32 1, %s6
  %s9 = scalar_select 0, %s8, %s6
  $region1: #{tpu_custom_call.1} parent=0
    #allocation2 [shape = 'u8[4096]{0}', space=vmem, size = 0x1000, scoped, tag = 'input window, operand 0, single buffered']
    #allocation3 [shape = 's32[1]{0}', space=sflag, size = 0x4, scoped, tag = 'scoped memory for tpu_custom_call.1']
    #allocation4 [shape = 's32[1]{0}', space=sflag, size = 0x4, scoped, tag = 'scoped memory for tpu_custom_call.1']
    #allocation5 [shape = 'u8[16384]{0}', space=vmem, size = 0x4000, scoped, tag = 'input window, operand 1, single buffered']
    #allocation6 [shape = 's32[1]{0}', space=sflag, size = 0x4, scoped, tag = 'scoped memory for tpu_custom_call.1']
    #allocation7 [shape = 'u8[4096]{0}', space=vmem, size = 0x1000, scoped, tag = 'output window, operand 0, single buffered']
    #allocation8 [shape = 'u8[4096]{0}', space=vmem, size = 0x1000, scoped, tag = 'output window, operand 1, single buffered']
    #allocation9 [shape = 's32[1]{0}', space=sflag, size = 0x4, scoped, tag = 'scoped memory for tpu_custom_call.1']
    %10 = vsyncpa [#allocation3], 0
    %11 = vsyncpa [#allocation6], 0
    %12 = vsyncpa [#allocation4], 0
    %13 = vsyncpa [#allocation9], 0
    // Predicated region
    $region2: #{tpu_custom_call.1} parent=1 // pred_check
      _
    $region3: #{tpu_custom_call.1} parent=1 // pred_check_branch
      %15 = sbr.rel (0) target = $region5
    $region4: #{tpu_custom_call.1} parent=1 // pred_region
      %s17 = ssub.s32 128, 128
      %18 = vsyncadd [#allocation3], %s17
      %s20 = sshll.u32 [#allocation2], 4
      %s21 = int_to_ptr.vmem [resolvable:$true] %s20
      %23 = dma.hbm_to_vmem [thread:$0]  %s0, 128, %s21, [#allocation3]
    $region5: #{tpu_custom_call.1} parent=1 // pred_fallthru
      _
    // Predicated region
    $region6: #{tpu_custom_call.1} parent=1 // pred_check
      _
    $region7: #{tpu_custom_call.1} parent=1 // pred_check_branch
      %25 = sbr.rel (0) target = $region9
    $region8: #{tpu_custom_call.1} parent=1 // pred_region
      %s27 = ssub.s32 512, 512
      %28 = vsyncadd [#allocation6], %s27
      %s29 = sshll.u32 [#allocation5], 4
      %s30 = int_to_ptr.vmem [resolvable:$true] %s29
      %35 = dma.hbm_to_vmem [thread:$0]  %s1, 512, %s30, [#allocation6], 128, 128, 8
    $region9: #{tpu_custom_call.1} parent=1 // pred_fallthru
      _
    // Predicated region
    $region10: #{tpu_custom_call.1} parent=1 // pred_check
      _
    $region11: #{tpu_custom_call.1} parent=1 // pred_check_branch
      %37 = sbr.rel (0) target = $region13
    $region12: #{tpu_custom_call.1} parent=1 // pred_region
      _
    $region13: #{tpu_custom_call.1} parent=1 // pred_fallthru
      _
    // Predicated region
    $region14: #{tpu_custom_call.1} parent=1 // pred_check
      _
    $region15: #{tpu_custom_call.1} parent=1 // pred_check_branch
      %39 = sbr.rel (0) target = $region17
    $region16: #{tpu_custom_call.1} parent=1 // pred_region
      %40 = dma.done [#allocation3], 128
    $region17: #{tpu_custom_call.1} parent=1 // pred_fallthru
      _
    // Predicated region
    $region18: #{tpu_custom_call.1} parent=1 // pred_check
      _
    $region19: #{tpu_custom_call.1} parent=1 // pred_check_branch
      %42 = sbr.rel (0) target = $region21
    $region20: #{tpu_custom_call.1} parent=1 // pred_region
      %43 = dma.done [#allocation6], 512
    $region21: #{tpu_custom_call.1} parent=1 // pred_fallthru
      _
    %v44 = vld [vmem:[#allocation2] sm:$0xff]
    %v45 = vld [vmem:[#allocation5] sm:$0xff]
    %v46 = vld [vmem:[#allocation5 + $0x8] sm:$0xff]
    %v47 = vld [vmem:[#allocation5 + $0x10] sm:$0xff]
    %v48 = vld [vmem:[#allocation5 + $0x18] sm:$0xff]
    %v49 = vld [vmem:[%s2] sm:$0x1]
    %v51 = vlaneseq
    %v52 = vshrl.u32 %v51, 7
    %v53 = vsub.s32 0, %v52
    %v54 = vrot.slane %v49, %v53
    %vm56 = vcmask 261120
    %v58 = vsel %vm56, %v44, 0
    %60 = vmatprep.subr.mxu0 0.0
    %61 = vmatpush1.msra.mxu0 0.0
    %62 = vmatprep.subr.mxu0 0.0
    %63 = vmatpush1.msra.mxu0 0.0
    %64 = vmatprep.subr.mxu0 0.0
    %65 = vmatpush1.msra.mxu0 0.0
    %66 = vmatprep.subr.mxu0 0.0
    %67 = vmatpush1.msra.mxu0 0.0
    %68 = vmatprep.subr.mxu0 0.0
    %69 = vmatpush1.msra.mxu0 0.0
    %70 = vmatprep.subr.mxu0 0.0
    %71 = vmatpush1.msra.mxu0 0.0
    %72 = vmatprep.subr.mxu0 0.0
    %73 = vmatpush1.msra.mxu0 0.0
    %74 = vmatprep.subr.mxu0 0.0
    %75 = vmatpush1.msra.mxu0 0.0
    %76 = vmatprep.subr.mxu0 0.0
    %77 = vmatpush1.msra.mxu0 0.0
    %78 = vmatprep.subr.mxu0 0.0
    %79 = vmatpush1.msra.mxu0 0.0
    %80 = vmatprep.subr.mxu0 0.0
    %81 = vmatpush1.msra.mxu0 0.0
    %82 = vmatprep.subr.mxu0 0.0
    %83 = vmatpush1.msra.mxu0 0.0
    %84 = vmatprep.subr.mxu0 0.0
    %85 = vmatpush1.msra.mxu0 %v48
    %86 = vmatprep.subr.mxu0 0.0
    %87 = vmatpush1.msra.mxu0 %v47
    %88 = vmatprep.subr.mxu0 0.0
    %89 = vmatpush1.msra.mxu0 %v46
    %90 = vmatprep.subr.mxu0 0.0
    %91 = vmatpush1.msra.mxu0 %v45
    %92 = vmatprep.subr.mxu0 0.0
    %93 = vmatpush2.msra.mxu0 0.0
    %94 = vmatprep.subr.mxu0 0.0
    %95 = vmatpush2.msra.mxu0 0.0
    %96 = vmatprep.subr.mxu0 0.0
    %97 = vmatpush2.msra.mxu0 0.0
    %98 = vmatprep.subr.mxu0 0.0
    %99 = vmatpush2.msra.mxu0 0.0
    %100 = vmatprep.subr.mxu0 0.0
    %101 = vmatpush2.msra.mxu0 0.0
    %102 = vmatprep.subr.mxu0 0.0
    %103 = vmatpush2.msra.mxu0 0.0
    %104 = vmatprep.subr.mxu0 0.0
    %105 = vmatpush2.msra.mxu0 0.0
    %106 = vmatprep.subr.mxu0 0.0
    %107 = vmatpush2.msra.mxu0 0.0
    %108 = vmatprep.subr.mxu0 0.0
    %109 = vmatpush2.msra.mxu0 0.0
    %110 = vmatprep.subr.mxu0 0.0
    %111 = vmatpush2.msra.mxu0 0.0
    %112 = vmatprep.subr.mxu0 0.0
    %113 = vmatpush2.msra.mxu0 0.0
    %114 = vmatprep.subr.mxu0 0.0
    %115 = vmatpush2.msra.mxu0 0.0
    %116 = vmatprep.subr.mxu0 0.0
    %117 = vmatpush2.msra.mxu0 0.0
    %118 = vmatprep.subr.mxu0 0.0
    %119 = vmatpush2.msra.mxu0 0.0
    %120 = vmatprep.subr.mxu0 0.0
    %121 = vmatpush2.msra.mxu0 0.0
    %122 = vmatprep.subr.mxu0 0.0
    %123 = vmatpush2.msra.mxu0 0.0
    %124 = vmatprep.mubr.f32.mxu0 0.0
    %125 = vmatmul.mubr.f32.gmra.mxu0 %v58
    %v126 = vpop.f32.mrf.mxu0
    %v127 = vadd.f32 %v54, %v126
    %v128 = vpop.f32.mrf.mxu0
    %129 = vdwg.mxu0
    %130 = vmax.xlane.f32.xlu0 %v127
    %v131 = vpop.xlane.xlu0 %130
    %v132 = vsub.f32 %v127, %v131
    %v133 = vmul.f32 %v132, 1.442695
    %v134 = vpow.pop %v133
    %135 = vadd.xlane.f32.xlu0 %v134
    %v136 = vpop.xlane.xlu0 %135
    %v137 = vlog2.pop %v136
    %v138 = vmul.f32 %v137, 0.6931472
    %v139 = vsub.f32 %v132, %v138
    %v140 = vrcp.pop %v136
    %v141 = vmul.f32 %v134, %v140
    %142 = vst [vmem:[#allocation7] sm:$0xff] %v139
    %143 = vst [vmem:[#allocation8] sm:$0xff] %v141
    // Predicated region
    $region22: #{tpu_custom_call.1} parent=1 // pred_check
      _
    $region23: #{tpu_custom_call.1} parent=1 // pred_check_branch
      %145 = sbr.rel (0) target = $region25
    $region24: #{tpu_custom_call.1} parent=1 // pred_region
      %s147 = ssub.s32 128, 128
      %148 = vsyncadd [#allocation4], %s147
      %s150 = sshll.u32 [#allocation7], 4
      %s151 = int_to_ptr.vmem [resolvable:$true] %s150
      %153 = dma.vmem_to_hbm [thread:$0]  %s151, 128, %s3, [#allocation4]
    $region25: #{tpu_custom_call.1} parent=1 // pred_fallthru
      _
    // Predicated region
    $region26: #{tpu_custom_call.1} parent=1 // pred_check
      _
    $region27: #{tpu_custom_call.1} parent=1 // pred_check_branch
      %155 = sbr.rel (0) target = $region29
    $region28: #{tpu_custom_call.1} parent=1 // pred_region
      %s157 = ssub.s32 128, 128
      %158 = vsyncadd [#allocation9], %s157
      %s160 = sshll.u32 [#allocation8], 4
      %s161 = int_to_ptr.vmem [resolvable:$true] %s160
      %163 = dma.vmem_to_hbm [thread:$0]  %s161, 128, %s4, [#allocation9]
    $region29: #{tpu_custom_call.1} parent=1 // pred_fallthru
      _
    // Predicated region
    $region30: #{tpu_custom_call.1} parent=1 // pred_check
      _
    $region31: #{tpu_custom_call.1} parent=1 // pred_check_branch
      %165 = sbr.rel (0) target = $region33
    $region32: #{tpu_custom_call.1} parent=1 // pred_region
      %166 = dma.done [#allocation4], 128
    $region33: #{tpu_custom_call.1} parent=1 // pred_fallthru
      _
    // Predicated region
    $region34: #{tpu_custom_call.1} parent=1 // pred_check
      _
    $region35: #{tpu_custom_call.1} parent=1 // pred_check_branch
      %168 = sbr.rel (0) target = $region37
    $region36: #{tpu_custom_call.1} parent=1 // pred_region
      %169 = dma.done [#allocation9], 128
    $region37: #{tpu_custom_call.1} parent=1 // pred_fallthru
      _
    %170 = vsyncpa [#allocation3], 1
    %171 = vsyncpa [#allocation6], 1
    %172 = vsyncpa [#allocation4], 1
    %173 = vsyncpa [#allocation9], 1

</llo_original>
